<compile_context>
chip_gen: v6e
topology: v6e:2x2x1
jax: 0.10.0
libtpu: 0.0.40
codegen_flags: <defaults>
</compile_context>

<pallas_src>
import jax
import jax.numpy as jnp
from jax.experimental import pallas as pl
from jax.experimental.pallas import tpu as pltpu


def _round_up(x, m):
    return ((x + m - 1) // m) * m


def _cdiv(a, b):
    return (a + b - 1) // b


def _vmem_budget_bytes():
    """Generation-aware VMEM budget: ~3/4 of per-core capacity.

    v5e/v6e (128 MiB) -> 96 MiB, v7x (64 MiB) -> 48 MiB.  Falls back to a
    conservative 48 MiB (safe on every generation) if the query fails.
    """
    try:
        info = pltpu.get_tpu_info()
        cap = int(getattr(info, "vmem_capacity_bytes", 0))
        if cap > 0:
            return (3 * cap) // 4
    except Exception:
        pass
    return 48 << 20


def _make_kernel(n_stacks, has_bias, compute_dtype):
    """Kernel over one lane-dense N tile; all stacks live in the block."""
    if has_bias:
        def kernel(w_ref, x_ref, b_ref, y_ref):
            # Static (unrolled) loop over the small stack axis: one MXU dot each.
            for s in range(n_stacks):
                w = w_ref[s].astype(compute_dtype)      # (2O, 2I) resident
                x = x_ref[s].astype(compute_dtype)      # (2I, TN)
                acc = jnp.dot(w, x, preferred_element_type=jnp.float32)
                y_ref[s] = acc + b_ref[s]               # (2O,1) broadcasts over TN
        return kernel

    def kernel(w_ref, x_ref, y_ref):
        for s in range(n_stacks):
            w = w_ref[s].astype(compute_dtype)
            x = x_ref[s].astype(compute_dtype)
            y_ref[s] = jnp.dot(w, x, preferred_element_type=jnp.float32)
    return kernel


def complex_linear_forward_stacked(w2, x2, b2=None, *, tile_n=1024,
                                   use_bf16=False, vmem_budget_bytes=None):
    """Core Pallas call on the stacked real-block layout.

    w2: (S, 2O, 2I) f32   [[wr, -wi], [wi, wr]]
    x2: (S, 2I, N)  f32   [xr; xi]
    b2: (S, 2O, 1)  f32   [br; bi]  (optional)
    returns y2: (S, 2O, N) f32   [yr; yi]

    Prefer this entry point when chaining layers: the stacked output feeds the
    next layer's stacked input with no split/recombine HBM pass.
    """
    S, O2, I2 = w2.shape
    _, _, N = x2.shape
    has_bias = b2 is not None

    w2 = w2.astype(jnp.float32)
    x2 = x2.astype(jnp.float32)
    if has_bias:
        b2 = b2.astype(jnp.float32)

    in_bytes = 4    # VMEM planes stay f32; the optional bf16 cast happens in-kernel
    out_bytes = 4
    budget = int(vmem_budget_bytes or _vmem_budget_bytes())

    # ---- lane-dense N tile (multiple of 128) under the VMEM budget ----------
    n_aligned = _round_up(N, 128)
    tn = min(_round_up(max(tile_n, 128), 128), n_aligned)

    def footprint(t):
        # double-buffered W/B (resident, conservative) + double-buffered X/Y tiles
        return (2 * S * O2 * I2 * in_bytes
                + 2 * S * O2 * 1 * in_bytes
                + 2 * S * I2 * t * in_bytes
                + 2 * S * O2 * t * out_bytes)

    while tn > 128 and footprint(tn) > budget:
        tn -= 128

    # Divisor-style tiling: pad waste <= 127 columns, stores stay unmasked vst.
    n_tiles = _cdiv(n_aligned, tn)
    tn = _round_up(_cdiv(n_aligned, n_tiles), 128)
    n_pad = tn * n_tiles

    if n_pad != N:
        x2 = jnp.pad(x2, ((0, 0), (0, 0), (0, n_pad - N)))

    compute_dtype = jnp.bfloat16 if use_bf16 else jnp.float32
    kernel = _make_kernel(S, has_bias, compute_dtype)

    # W/B index maps are constant in n -> fetched once, VMEM-resident for all tiles.
    w_spec = pl.BlockSpec((S, O2, I2), lambda n: (0, 0, 0))
    x_spec = pl.BlockSpec((S, I2, tn), lambda n: (0, 0, n))
    b_spec = pl.BlockSpec((S, O2, 1), lambda n: (0, 0, 0))
    y_spec = pl.BlockSpec((S, O2, tn), lambda n: (0, 0, n))

    in_specs = [w_spec, x_spec] + ([b_spec] if has_bias else [])
    operands = (w2, x2) + ((b2,) if has_bias else ())

    flops = S * (2 * O2 * I2 + (O2 if has_bias else 0)) * n_pad
    bytes_accessed = (S * O2 * I2 * in_bytes
                      + S * I2 * n_pad * in_bytes
                      + (S * O2 * in_bytes if has_bias else 0)
                      + S * O2 * n_pad * out_bytes)

    vmem_limit = int(min(budget, max(footprint(tn) + (4 << 20), 16 << 20)))

    y2 = pl.pallas_call(
        kernel,
        out_shape=jax.ShapeDtypeStruct((S, O2, n_pad), jnp.float32),
        grid_spec=pltpu.PrefetchScalarGridSpec(
            num_scalar_prefetch=0,
            grid=(n_tiles,),
            in_specs=in_specs,
            out_specs=y_spec,
        ),
        compiler_params=pltpu.CompilerParams(
            dimension_semantics=("parallel",),
            vmem_limit_bytes=vmem_limit,
        ),
        cost_estimate=pl.CostEstimate(flops=flops, transcendentals=0,
                                      bytes_accessed=bytes_accessed),
    )(*operands)

    if n_pad != N:
        y2 = y2[:, :, :N]
    return y2


def build_stacked_weight(wr, wi):
    """(S,O,I) real/imag planes -> (S, 2O, 2I) real-block matrix [[wr,-wi],[wi,wr]]."""
    top = jnp.concatenate([wr, -wi], axis=-1)
    bot = jnp.concatenate([wi, wr], axis=-1)
    return jnp.concatenate([top, bot], axis=-2)


def build_stacked_bias(br, bi):
    """(S,O,1) real/imag planes -> (S, 2O, 1) stacked [br; bi]."""
    return jnp.concatenate([br, bi], axis=-2)


def complex_linear_forward_planar(wr, wi, xr, xi, br=None, bi=None, **kwargs):
    """Planar-f32 forward. Returns (yr, yi) of shape (S, O, N)."""
    S, O, I = wr.shape
    w2 = build_stacked_weight(wr.astype(jnp.float32), wi.astype(jnp.float32))
    x2 = jnp.concatenate([xr, xi], axis=-2).astype(jnp.float32)
    b2 = None
    if br is not None:
        b2 = build_stacked_bias(br.astype(jnp.float32), bi.astype(jnp.float32))
    y2 = complex_linear_forward_stacked(w2, x2, b2, **kwargs)
    return y2[:, :O, :], y2[:, O:, :]


def complex_linear_forward(W, X, B=None, **kwargs):
    """Complex convenience wrapper: W (S,O,I), X (S,I,N), B (S,O,1) -> (S,O,N) c64.

    Note: the split + recombine here costs one extra HBM pass; prefer the
    stacked/planar entry points when chaining layers.
    """
    wr = jnp.real(W).astype(jnp.float32)
    wi = jnp.imag(W).astype(jnp.float32)
    xr = jnp.real(X).astype(jnp.float32)
    xi = jnp.imag(X).astype(jnp.float32)
    br = bi = None
    if B is not None:
        br = jnp.real(B).astype(jnp.float32)
        bi = jnp.imag(B).astype(jnp.float32)
    yr, yi = complex_linear_forward_planar(wr, wi, xr, xi, br, bi, **kwargs)
    return (yr + 1j * yi).astype(jnp.complex64)


if __name__ == "__main__":
    # Small shapes consistent with the module's 3-D (non-DD) forward branch.
    stack_features, in_features, out_features, n_points = 3, 16, 32, 300
    scaling = 1.0

    key = jax.random.PRNGKey(0)
    k_wr, k_wi, k_xr, k_xi = jax.random.split(key, 4)

    # Scaled complex He init: Re/Im ~ N(0, sqrt(scaling)/sqrt(2*in_features)); bias = 0.
    std = (scaling ** 0.5) / ((2.0 * in_features) ** 0.5)
    W = (std * jax.random.normal(k_wr, (stack_features, out_features, in_features))
         + 1j * std * jax.random.normal(k_wi, (stack_features, out_features, in_features))
         ).astype(jnp.complex64)
    B = jnp.zeros((stack_features, out_features, 1), dtype=jnp.complex64)

    X = (jax.random.normal(k_xr, (stack_features, in_features, n_points))
         + 1j * jax.random.normal(k_xi, (stack_features, in_features, n_points))
         ).astype(jnp.complex64)

    # Reference (same semantics as torch.einsum('abc,acd->abd', W, x) + B).
    Y_ref_bias = jnp.einsum('abc,acd->abd', W, X,
                            precision=jax.lax.Precision.HIGHEST) + B
    Y_ref_nobias = jnp.einsum('abc,acd->abd', W, X,
                              precision=jax.lax.Precision.HIGHEST)

    # 1) has_bias=True, default large tile (single grid step; N padded 300->384).
    Y = complex_linear_forward(W, X, B)
    jax.block_until_ready(Y)
    assert Y.shape == (stack_features, out_features, n_points)
    assert jnp.allclose(Y, Y_ref_bias, atol=1e-3, rtol=1e-3), \
        float(jnp.max(jnp.abs(Y - Y_ref_bias)))

    # 2) has_bias=False, small tile (multi-tile N grid exercises the pipeline).
    Y2 = complex_linear_forward(W, X, None, tile_n=128)
    jax.block_until_ready(Y2)
    assert jnp.allclose(Y2, Y_ref_nobias, atol=1e-3, rtol=1e-3), \
        float(jnp.max(jnp.abs(Y2 - Y_ref_nobias)))

    print("KERNEL_OK")
</pallas_src>

<mosaic_0001>
module attributes {stable_mosaic.version = 11 : i64} {
  func.func @kernel(%arg0: i32, %arg1: memref<3x64x32xf32, #tpu.memory_space<vmem>>, %arg2: memref<3x32x384xf32, #tpu.memory_space<vmem>>, %arg3: memref<3x64x1xf32, #tpu.memory_space<vmem>>, %arg4: memref<3x64x384xf32, #tpu.memory_space<vmem>>) attributes {dimension_semantics = [#tpu.dimension_semantics<parallel>], iteration_bounds = array<i64: 1>, scalar_prefetch = 0 : i64, scratch_operands = 0 : i64, tpu.core_type = #tpu.core_type<tc>, window_params = [{pipeline_mode = #tpu.pipeline_mode<synchronous>, transform_indices = @transform_0, window_bounds = array<i64: 3, 64, 32>}, {transform_indices = @transform_1, window_bounds = array<i64: 3, 32, 384>}, {pipeline_mode = #tpu.pipeline_mode<synchronous>, transform_indices = @transform_2, window_bounds = array<i64: 3, 64, 1>}, {transform_indices = @transform_3, window_bounds = array<i64: 3, 64, 384>}]} {
    %c0 = arith.constant 0 : index
    %c0_0 = arith.constant 0 : index
    %c0_1 = arith.constant 0 : index
    %0 = vector.load %arg1[%c0, %c0_0, %c0_1] : memref<3x64x32xf32, #tpu.memory_space<vmem>>, vector<1x64x32xf32>
    %1 = vector.shape_cast %0 : vector<1x64x32xf32> to vector<64x32xf32>
    %c0_2 = arith.constant 0 : index
    %c0_3 = arith.constant 0 : index
    %c0_4 = arith.constant 0 : index
    %2 = vector.load %arg2[%c0_2, %c0_3, %c0_4] : memref<3x32x384xf32, #tpu.memory_space<vmem>>, vector<1x32x384xf32>
    %3 = vector.shape_cast %2 : vector<1x32x384xf32> to vector<32x384xf32>
    %cst = arith.constant dense<0.000000e+00> : vector<64x384xf32>
    %4 = tpu.matmul %1, %3, %cst {dimension_numbers = #tpu.dot_dimension_numbers<[1], [0], [0], [1], [0, 0, 1, 1], [], []>} : vector<64x32xf32>, vector<32x384xf32>, vector<64x384xf32> -> vector<64x384xf32>
    %c0_5 = arith.constant 0 : index
    %c0_6 = arith.constant 0 : index
    %c0_7 = arith.constant 0 : index
    %5 = vector.load %arg3[%c0_5, %c0_6, %c0_7] : memref<3x64x1xf32, #tpu.memory_space<vmem>>, vector<1x64x1xf32>
    %6 = vector.shape_cast %5 : vector<1x64x1xf32> to vector<64x1xf32>
    %7 = vector.broadcast %6 : vector<64x1xf32> to vector<64x384xf32>
    %8 = arith.addf %4, %7 : vector<64x384xf32>
    %c0_8 = arith.constant 0 : index
    %c0_9 = arith.constant 0 : index
    %c0_10 = arith.constant 0 : index
    %9 = vector.load %arg4[%c0_8, %c0_9, %c0_10] : memref<3x64x384xf32, #tpu.memory_space<vmem>>, vector<1x64x384xf32>
    %10 = vector.shape_cast %9 : vector<1x64x384xf32> to vector<64x384xf32>
    %11 = vector.shape_cast %8 : vector<64x384xf32> to vector<1x64x384xf32>
    tpu.vector_store %arg4[%c0_8, %c0_9, %c0_10], %11 {strides = array<i32>} : memref<3x64x384xf32, #tpu.memory_space<vmem>>, vector<1x64x384xf32>,
    %c1 = arith.constant 1 : index
    %c0_11 = arith.constant 0 : index
    %c0_12 = arith.constant 0 : index
    %12 = vector.load %arg1[%c1, %c0_11, %c0_12] : memref<3x64x32xf32, #tpu.memory_space<vmem>>, vector<1x64x32xf32>
    %13 = vector.shape_cast %12 : vector<1x64x32xf32> to vector<64x32xf32>
    %c1_13 = arith.constant 1 : index
    %c0_14 = arith.constant 0 : index
    %c0_15 = arith.constant 0 : index
    %14 = vector.load %arg2[%c1_13, %c0_14, %c0_15] : memref<3x32x384xf32, #tpu.memory_space<vmem>>, vector<1x32x384xf32>
    %15 = vector.shape_cast %14 : vector<1x32x384xf32> to vector<32x384xf32>
    %cst_16 = arith.constant dense<0.000000e+00> : vector<64x384xf32>
    %16 = tpu.matmul %13, %15, %cst_16 {dimension_numbers = #tpu.dot_dimension_numbers<[1], [0], [0], [1], [0, 0, 1, 1], [], []>} : vector<64x32xf32>, vector<32x384xf32>, vector<64x384xf32> -> vector<64x384xf32>
    %c1_17 = arith.constant 1 : index
    %c0_18 = arith.constant 0 : index
    %c0_19 = arith.constant 0 : index
    %17 = vector.load %arg3[%c1_17, %c0_18, %c0_19] : memref<3x64x1xf32, #tpu.memory_space<vmem>>, vector<1x64x1xf32>
    %18 = vector.shape_cast %17 : vector<1x64x1xf32> to vector<64x1xf32>
    %19 = vector.broadcast %18 : vector<64x1xf32> to vector<64x384xf32>
    %20 = arith.addf %16, %19 : vector<64x384xf32>
    %c1_20 = arith.constant 1 : index
    %c0_21 = arith.constant 0 : index
    %c0_22 = arith.constant 0 : index
    %21 = vector.load %arg4[%c1_20, %c0_21, %c0_22] : memref<3x64x384xf32, #tpu.memory_space<vmem>>, vector<1x64x384xf32>
    %22 = vector.shape_cast %21 : vector<1x64x384xf32> to vector<64x384xf32>
    %23 = vector.shape_cast %20 : vector<64x384xf32> to vector<1x64x384xf32>
    tpu.vector_store %arg4[%c1_20, %c0_21, %c0_22], %23 {strides = array<i32>} : memref<3x64x384xf32, #tpu.memory_space<vmem>>, vector<1x64x384xf32>,
    %c2 = arith.constant 2 : index
    %c0_23 = arith.constant 0 : index
    %c0_24 = arith.constant 0 : index
    %24 = vector.load %arg1[%c2, %c0_23, %c0_24] : memref<3x64x32xf32, #tpu.memory_space<vmem>>, vector<1x64x32xf32>
    %25 = vector.shape_cast %24 : vector<1x64x32xf32> to vector<64x32xf32>
    %c2_25 = arith.constant 2 : index
    %c0_26 = arith.constant 0 : index
    %c0_27 = arith.constant 0 : index
    %26 = vector.load %arg2[%c2_25, %c0_26, %c0_27] : memref<3x32x384xf32, #tpu.memory_space<vmem>>, vector<1x32x384xf32>
    %27 = vector.shape_cast %26 : vector<1x32x384xf32> to vector<32x384xf32>
    %cst_28 = arith.constant dense<0.000000e+00> : vector<64x384xf32>
    %28 = tpu.matmul %25, %27, %cst_28 {dimension_numbers = #tpu.dot_dimension_numbers<[1], [0], [0], [1], [0, 0, 1, 1], [], []>} : vector<64x32xf32>, vector<32x384xf32>, vector<64x384xf32> -> vector<64x384xf32>
    %c2_29 = arith.constant 2 : index
    %c0_30 = arith.constant 0 : index
    %c0_31 = arith.constant 0 : index
    %29 = vector.load %arg3[%c2_29, %c0_30, %c0_31] : memref<3x64x1xf32, #tpu.memory_space<vmem>>, vector<1x64x1xf32>
    %30 = vector.shape_cast %29 : vector<1x64x1xf32> to vector<64x1xf32>
    %31 = vector.broadcast %30 : vector<64x1xf32> to vector<64x384xf32>
    %32 = arith.addf %28, %31 : vector<64x384xf32>
    %c2_32 = arith.constant 2 : index
    %c0_33 = arith.constant 0 : index
    %c0_34 = arith.constant 0 : index
    %33 = vector.load %arg4[%c2_32, %c0_33, %c0_34] : memref<3x64x384xf32, #tpu.memory_space<vmem>>, vector<1x64x384xf32>
    %34 = vector.shape_cast %33 : vector<1x64x384xf32> to vector<64x384xf32>
    %35 = vector.shape_cast %32 : vector<64x384xf32> to vector<1x64x384xf32>
    tpu.vector_store %arg4[%c2_32, %c0_33, %c0_34], %35 {strides = array<i32>} : memref<3x64x384xf32, #tpu.memory_space<vmem>>, vector<1x64x384xf32>,
    return
  }
  func.func @transform_0(%arg0: i32) -> (i32, i32, i32) {
    %c0_i32 = arith.constant 0 : i32
    %c0_i32_0 = arith.constant 0 : i32
    %c0_i32_1 = arith.constant 0 : i32
    %c0_i32_2 = arith.constant 0 : i32
    return %c0_i32, %c0_i32_0, %c0_i32_1 : i32, i32, i32
  }
  func.func @transform_1(%arg0: i32) -> (i32, i32, i32) {
    %c0_i32 = arith.constant 0 : i32
    %c0_i32_0 = arith.constant 0 : i32
    %c0_i32_1 = arith.constant 0 : i32
    return %c0_i32, %c0_i32_0, %arg0 : i32, i32, i32
  }
  func.func @transform_2(%arg0: i32) -> (i32, i32, i32) {
    %c0_i32 = arith.constant 0 : i32
    %c0_i32_0 = arith.constant 0 : i32
    %c0_i32_1 = arith.constant 0 : i32
    %c0_i32_2 = arith.constant 0 : i32
    return %c0_i32, %c0_i32_0, %c0_i32_1 : i32, i32, i32
  }
  func.func @transform_3(%arg0: i32) -> (i32, i32, i32) {
    %c0_i32 = arith.constant 0 : i32
    %c0_i32_0 = arith.constant 0 : i32
    %c0_i32_1 = arith.constant 0 : i32
    return %c0_i32, %c0_i32_0, %arg0 : i32, i32, i32
  }
}

</mosaic_0001>

<llo_original>
// kernel: tpu_custom_call.1
$region0: #{tpu_custom_call.1}
  #allocation0 [shape = 'u32[]', space=smem, size = 0x4, offset = 0x4, fixed_abs, tag = 'smem constant byte address 0x4 - core index']
  #allocation1 [shape = 'u32[144,128]{1,0:T(1,128)}', space=vmem, size = 0x12000, scoped, tag = 'internal scratch']
  %s0 = inlined_call_operand.vmem [shape: f32[3,64,32], index: 0, kind: input, shape index: {}]
  %s1 = inlined_call_operand.vmem [shape: f32[3,32,384], index: 1, kind: input, shape index: {}]
  %s2 = inlined_call_operand.vmem [shape: f32[3,64,1], index: 2, kind: input, shape index: {}]
  %s3 = inlined_call_operand.hbm [shape: f32[3,64,384], index: 3, kind: output, shape index: {}]
  %s4 = sld [smem:[#allocation0]]
  $region22: #{tpu_custom_call.1} parent=0
    _
  %s6 = ssub.s32 1, %s4
  %s7 = scalar_select 0, %s6, %s4
  $region1: #{tpu_custom_call.1} parent=0
    #allocation2 [shape = 'u8[294912]{0}', space=vmem, size = 0x48000, scoped, tag = 'output window, operand 0, single buffered']
    #allocation3 [shape = 's32[1]{0}', space=sflag, size = 0x4, scoped, tag = 'scoped memory for tpu_custom_call.1']
    %8 = vsyncpa [#allocation3], 0
    // Predicated region
    $region2: #{tpu_custom_call.1} parent=1 // pred_check
      _
    $region3: #{tpu_custom_call.1} parent=1 // pred_check_branch
      %10 = sbr.rel (0) target = $region5
    $region4: #{tpu_custom_call.1} parent=1 // pred_region
      _
    $region5: #{tpu_custom_call.1} parent=1 // pred_fallthru
      _
    // Predicated region
    $region6: #{tpu_custom_call.1} parent=1 // pred_check
      _
    $region7: #{tpu_custom_call.1} parent=1 // pred_check_branch
      %12 = sbr.rel (0) target = $region9
    $region8: #{tpu_custom_call.1} parent=1 // pred_region
      _
    $region9: #{tpu_custom_call.1} parent=1 // pred_fallthru
      _
    // Predicated region
    $region10: #{tpu_custom_call.1} parent=1 // pred_check
      _
    $region11: #{tpu_custom_call.1} parent=1 // pred_check_branch
      %14 = sbr.rel (0) target = $region13
    $region12: #{tpu_custom_call.1} parent=1 // pred_region
      _
    $region13: #{tpu_custom_call.1} parent=1 // pred_fallthru
      _
    %v15 = vld [vmem:[%s0] sm:$0xff]
    %v16 = vld [vmem:[%s0 + $0x8] sm:$0xff]
    %v17 = vld [vmem:[%s0 + $0x10] sm:$0xff]
    %v18 = vld [vmem:[%s0 + $0x18] sm:$0xff]
    %v19 = vld [vmem:[%s0 + $0x20] sm:$0xff]
    %v20 = vld [vmem:[%s0 + $0x28] sm:$0xff]
    %v21 = vld [vmem:[%s0 + $0x30] sm:$0xff]
    %v22 = vld [vmem:[%s0 + $0x38] sm:$0xff]
    %v23 = vld [vmem:[%s1] sm:$0xff]
    %v24 = vld [vmem:[%s1 + $0x8] sm:$0xff]
    %v25 = vld [vmem:[%s1 + $0x10] sm:$0xff]
    %v26 = vld [vmem:[%s1 + $0x18] sm:$0xff]
    %v27 = vld [vmem:[%s1 + $0x20] sm:$0xff]
    %v28 = vld [vmem:[%s1 + $0x28] sm:$0xff]
    %v29 = vld [vmem:[%s1 + $0x30] sm:$0xff]
    %v30 = vld [vmem:[%s1 + $0x38] sm:$0xff]
    %v31 = vld [vmem:[%s1 + $0x40] sm:$0xff]
    %v32 = vld [vmem:[%s1 + $0x48] sm:$0xff]
    %v33 = vld [vmem:[%s1 + $0x50] sm:$0xff]
    %v34 = vld [vmem:[%s1 + $0x58] sm:$0xff]
    %v35 = vld [vmem:[%s2] sm:$0xff]
    %v36 = vld [vmem:[%s2 + $0x8] sm:$0xff]
    %v37 = vld [vmem:[%s2 + $0x10] sm:$0xff]
    %v38 = vld [vmem:[%s2 + $0x18] sm:$0xff]
    %v39 = vld [vmem:[%s2 + $0x20] sm:$0xff]
    %v40 = vld [vmem:[%s2 + $0x28] sm:$0xff]
    %v41 = vld [vmem:[%s2 + $0x30] sm:$0xff]
    %v42 = vld [vmem:[%s2 + $0x38] sm:$0xff]
    %44 = vset.pattern.permute.xlu0 0
    %45 = vperm.xlu0 %44, %v35
    %v46 = vpop.permute.xlu0 %45
    %49 = vset.pattern.permute.xlu0 0
    %50 = vperm.xlu0 %49, %v36
    %v51 = vpop.permute.xlu0 %50
    %54 = vset.pattern.permute.xlu0 0
    %55 = vperm.xlu0 %54, %v37
    %v56 = vpop.permute.xlu0 %55
    %59 = vset.pattern.permute.xlu0 0
    %60 = vperm.xlu0 %59, %v38
    %v61 = vpop.permute.xlu0 %60
    %64 = vset.pattern.permute.xlu0 0
    %65 = vperm.xlu0 %64, %v39
    %v66 = vpop.permute.xlu0 %65
    %69 = vset.pattern.permute.xlu0 0
    %70 = vperm.xlu0 %69, %v40
    %v71 = vpop.permute.xlu0 %70
    %74 = vset.pattern.permute.xlu0 0
    %75 = vperm.xlu0 %74, %v41
    %v76 = vpop.permute.xlu0 %75
    %79 = vset.pattern.permute.xlu0 0
    %80 = vperm.xlu0 %79, %v42
    %v81 = vpop.permute.xlu0 %80
    %vm83 = vcmask 261120
    %v85 = vsel %vm83, %v15, 0
    %v88 = vsel %vm83, %v16, 0
    %v91 = vsel %vm83, %v17, 0
    %v94 = vsel %vm83, %v18, 0
    %v97 = vsel %vm83, %v19, 0
    %v100 = vsel %vm83, %v20, 0
    %v103 = vsel %vm83, %v21, 0
    %v106 = vsel %vm83, %v22, 0
    %108 = vmatprep.subr.mxu0 0.0
    %109 = vmatpush1.msra.mxu0 0.0
    %110 = vmatprep.subr.mxu0 0.0
    %111 = vmatpush1.msra.mxu0 0.0
    %112 = vmatprep.subr.mxu0 0.0
    %113 = vmatpush1.msra.mxu0 0.0
    %114 = vmatprep.subr.mxu0 0.0
    %115 = vmatpush1.msra.mxu0 0.0
    %116 = vmatprep.subr.mxu0 0.0
    %117 = vmatpush1.msra.mxu0 0.0
    %118 = vmatprep.subr.mxu0 0.0
    %119 = vmatpush1.msra.mxu0 0.0
    %120 = vmatprep.subr.mxu0 0.0
    %121 = vmatpush1.msra.mxu0 0.0
    %122 = vmatprep.subr.mxu0 0.0
    %123 = vmatpush1.msra.mxu0 0.0
    %124 = vmatprep.subr.mxu0 0.0
    %125 = vmatpush1.msra.mxu0 0.0
    %126 = vmatprep.subr.mxu0 0.0
    %127 = vmatpush1.msra.mxu0 0.0
    %128 = vmatprep.subr.mxu0 0.0
    %129 = vmatpush1.msra.mxu0 0.0
    %130 = vmatprep.subr.mxu0 0.0
    %131 = vmatpush1.msra.mxu0 0.0
    %132 = vmatprep.subr.mxu0 %v33
    %133 = vmatpush1.msra.mxu0 %v32
    %134 = vmatprep.subr.mxu0 %v30
    %135 = vmatpush1.msra.mxu0 %v29
    %136 = vmatprep.subr.mxu0 %v27
    %137 = vmatpush1.msra.mxu0 %v26
    %138 = vmatprep.subr.mxu0 %v24
    %139 = vmatpush1.msra.mxu0 %v23
    %140 = vmatprep.subr.mxu0 0.0
    %141 = vmatpush2.msra.mxu0 0.0
    %142 = vmatprep.subr.mxu0 0.0
    %143 = vmatpush2.msra.mxu0 0.0
    %144 = vmatprep.subr.mxu0 0.0
    %145 = vmatpush2.msra.mxu0 0.0
    %146 = vmatprep.subr.mxu0 0.0
    %147 = vmatpush2.msra.mxu0 0.0
    %148 = vmatprep.subr.mxu0 0.0
    %149 = vmatpush2.msra.mxu0 0.0
    %150 = vmatprep.subr.mxu0 0.0
    %151 = vmatpush2.msra.mxu0 0.0
    %152 = vmatprep.subr.mxu0 0.0
    %153 = vmatpush2.msra.mxu0 0.0
    %154 = vmatprep.subr.mxu0 0.0
    %155 = vmatpush2.msra.mxu0 0.0
    %156 = vmatprep.subr.mxu0 0.0
    %157 = vmatpush2.msra.mxu0 0.0
    %158 = vmatprep.subr.mxu0 0.0
    %159 = vmatpush2.msra.mxu0 0.0
    %160 = vmatprep.subr.mxu0 0.0
    %161 = vmatpush2.msra.mxu0 0.0
    %162 = vmatprep.subr.mxu0 0.0
    %163 = vmatpush2.msra.mxu0 0.0
    %164 = vmatprep.subr.mxu0 0.0
    %165 = vmatpush2.msra.mxu0 0.0
    %166 = vmatprep.subr.mxu0 0.0
    %167 = vmatpush2.msra.mxu0 0.0
    %168 = vmatprep.subr.mxu0 0.0
    %169 = vmatpush2.msra.mxu0 0.0
    %170 = vmatprep.subr.mxu0 0.0
    %171 = vmatpush2.msra.mxu0 0.0
    %172 = vmatprep.mubr.f32.mxu0 0.0
    %173 = vmatmul.mubr.f32.gmra.mxu0 %v85
    %v174 = vpop.f32.mrf.mxu0
    %v175 = vadd.f32 %v46, %v174
    %v176 = vpop.f32.mrf.mxu0
    %v177 = vadd.f32 %v46, %v176
    %178 = vmatprep.mubr.f32.mxu0 0.0
    %179 = vmatmul.mubr.f32.gmra.mxu0 %v88
    %v180 = vpop.f32.mrf.mxu0
    %v181 = vadd.f32 %v51, %v180
    %v182 = vpop.f32.mrf.mxu0
    %v183 = vadd.f32 %v51, %v182
    %184 = vmatprep.mubr.f32.mxu0 0.0
    %185 = vmatmul.mubr.f32.gmra.mxu0 %v91
    %v186 = vpop.f32.mrf.mxu0
    %v187 = vadd.f32 %v56, %v186
    %v188 = vpop.f32.mrf.mxu0
    %v189 = vadd.f32 %v56, %v188
    %190 = vmatprep.mubr.f32.mxu0 0.0
    %191 = vmatmul.mubr.f32.gmra.mxu0 %v94
    %v192 = vpop.f32.mrf.mxu0
    %v193 = vadd.f32 %v61, %v192
    %v194 = vpop.f32.mrf.mxu0
    %v195 = vadd.f32 %v61, %v194
    %196 = vmatprep.mubr.f32.mxu0 0.0
    %197 = vmatmul.mubr.f32.gmra.mxu0 %v97
    %v198 = vpop.f32.mrf.mxu0
    %v199 = vadd.f32 %v66, %v198
    %v200 = vpop.f32.mrf.mxu0
    %v201 = vadd.f32 %v66, %v200
    %202 = vmatprep.mubr.f32.mxu0 0.0
    %203 = vmatmul.mubr.f32.gmra.mxu0 %v100
    %v204 = vpop.f32.mrf.mxu0
    %v205 = vadd.f32 %v71, %v204
    %v206 = vpop.f32.mrf.mxu0
    %v207 = vadd.f32 %v71, %v206
    %208 = vmatprep.mubr.f32.mxu0 0.0
    %209 = vmatmul.mubr.f32.gmra.mxu0 %v103
    %v210 = vpop.f32.mrf.mxu0
    %v211 = vadd.f32 %v76, %v210
    %v212 = vpop.f32.mrf.mxu0
    %v213 = vadd.f32 %v76, %v212
    %214 = vmatprep.mubr.f32.mxu0 0.0
    %215 = vmatmul.mubr.f32.gmra.mxu0 %v106
    %v216 = vpop.f32.mrf.mxu0
    %v217 = vadd.f32 %v81, %v216
    %v218 = vpop.f32.mrf.mxu0
    %v219 = vadd.f32 %v81, %v218
    %220 = vdwg.mxu0
    %221 = vmatprep.subr.mxu0 0.0
    %222 = vmatpush1.msra.mxu0 0.0
    %223 = vmatprep.subr.mxu0 0.0
    %224 = vmatpush1.msra.mxu0 0.0
    %225 = vmatprep.subr.mxu0 0.0
    %226 = vmatpush1.msra.mxu0 0.0
    %227 = vmatprep.subr.mxu0 0.0
    %228 = vmatpush1.msra.mxu0 0.0
    %229 = vmatprep.subr.mxu0 0.0
    %230 = vmatpush1.msra.mxu0 0.0
    %231 = vmatprep.subr.mxu0 0.0
    %232 = vmatpush1.msra.mxu0 0.0
    %233 = vmatprep.subr.mxu0 0.0
    %234 = vmatpush1.msra.mxu0 0.0
    %235 = vmatprep.subr.mxu0 0.0
    %236 = vmatpush1.msra.mxu0 0.0
    %237 = vmatprep.subr.mxu0 0.0
    %238 = vmatpush1.msra.mxu0 0.0
    %239 = vmatprep.subr.mxu0 0.0
    %240 = vmatpush1.msra.mxu0 0.0
    %241 = vmatprep.subr.mxu0 0.0
    %242 = vmatpush1.msra.mxu0 0.0
    %243 = vmatprep.subr.mxu0 0.0
    %244 = vmatpush1.msra.mxu0 0.0
    %245 = vmatprep.subr.mxu0 0.0
    %246 = vmatpush1.msra.mxu0 %v34
    %247 = vmatprep.subr.mxu0 0.0
    %248 = vmatpush1.msra.mxu0 %v31
    %249 = vmatprep.subr.mxu0 0.0
    %250 = vmatpush1.msra.mxu0 %v28
    %251 = vmatprep.subr.mxu0 0.0
    %252 = vmatpush1.msra.mxu0 %v25
    %253 = vmatprep.subr.mxu0 0.0
    %254 = vmatpush2.msra.mxu0 0.0
    %255 = vmatprep.subr.mxu0 0.0
    %256 = vmatpush2.msra.mxu0 0.0
    %257 = vmatprep.subr.mxu0 0.0
    %258 = vmatpush2.msra.mxu0 0.0
    %259 = vmatprep.subr.mxu0 0.0
    %260 = vmatpush2.msra.mxu0 0.0
    %261 = vmatprep.subr.mxu0 0.0
    %262 = vmatpush2.msra.mxu0 0.0
    %263 = vmatprep.subr.mxu0 0.0
    %264 = vmatpush2.msra.mxu0 0.0
    %265 = vmatprep.subr.mxu0 0.0
    %266 = vmatpush2.msra.mxu0 0.0
    %267 = vmatprep.subr.mxu0 0.0
    %268 = vmatpush2.msra.mxu0 0.0
    %269 = vmatprep.subr.mxu0 0.0
    %270 = vmatpush2.msra.mxu0 0.0
    %271 = vmatprep.subr.mxu0 0.0
    %272 = vmatpush2.msra.mxu0 0.0
    %273 = vmatprep.subr.mxu0 0.0
    %274 = vmatpush2.msra.mxu0 0.0
    %275 = vmatprep.subr.mxu0 0.0
    %276 = vmatpush2.msra.mxu0 0.0
    %277 = vmatprep.subr.mxu0 0.0
    %278 = vmatpush2.msra.mxu0 0.0
    %279 = vmatprep.subr.mxu0 0.0
    %280 = vmatpush2.msra.mxu0 0.0
    %281 = vmatprep.subr.mxu0 0.0
    %282 = vmatpush2.msra.mxu0 0.0
    %283 = vmatprep.subr.mxu0 0.0
    %284 = vmatpush2.msra.mxu0 0.0
    %285 = vmatprep.mubr.f32.mxu0 0.0
    %286 = vmatmul.mubr.f32.gmra.mxu0 %v85
    %v287 = vpop.f32.mrf.mxu0
    %v288 = vadd.f32 %v46, %v287
    %v289 = vpop.f32.mrf.mxu0
    %290 = vmatprep.mubr.f32.mxu0 0.0
    %291 = vmatmul.mubr.f32.gmra.mxu0 %v88
    %v292 = vpop.f32.mrf.mxu0
    %v293 = vadd.f32 %v51, %v292
    %v294 = vpop.f32.mrf.mxu0
    %295 = vmatprep.mubr.f32.mxu0 0.0
    %296 = vmatmul.mubr.f32.gmra.mxu0 %v91
    %v297 = vpop.f32.mrf.mxu0
    %v298 = vadd.f32 %v56, %v297
    %v299 = vpop.f32.mrf.mxu0
    %300 = vmatprep.mubr.f32.mxu0 0.0
    %301 = vmatmul.mubr.f32.gmra.mxu0 %v94
    %v302 = vpop.f32.mrf.mxu0
    %v303 = vadd.f32 %v61, %v302
    %v304 = vpop.f32.mrf.mxu0
    %305 = vmatprep.mubr.f32.mxu0 0.0
    %306 = vmatmul.mubr.f32.gmra.mxu0 %v97
    %v307 = vpop.f32.mrf.mxu0
    %v308 = vadd.f32 %v66, %v307
    %v309 = vpop.f32.mrf.mxu0
    %310 = vmatprep.mubr.f32.mxu0 0.0
    %311 = vmatmul.mubr.f32.gmra.mxu0 %v100
    %v312 = vpop.f32.mrf.mxu0
    %v313 = vadd.f32 %v71, %v312
    %v314 = vpop.f32.mrf.mxu0
    %315 = vmatprep.mubr.f32.mxu0 0.0
    %316 = vmatmul.mubr.f32.gmra.mxu0 %v103
    %v317 = vpop.f32.mrf.mxu0
    %v318 = vadd.f32 %v76, %v317
    %v319 = vpop.f32.mrf.mxu0
    %320 = vmatprep.mubr.f32.mxu0 0.0
    %321 = vmatmul.mubr.f32.gmra.mxu0 %v106
    %v322 = vpop.f32.mrf.mxu0
    %v323 = vadd.f32 %v81, %v322
    %v324 = vpop.f32.mrf.mxu0
    %325 = vdwg.mxu0
    %326 = vst [vmem:[#allocation2] sm:$0xff] %v175
    %327 = vst [vmem:[#allocation2 + $0x8] sm:$0xff] %v177
    %328 = vst [vmem:[#allocation2 + $0x10] sm:$0xff] %v288
    %329 = vst [vmem:[#allocation2 + $0x18] sm:$0xff] %v181
    %330 = vst [vmem:[#allocation2 + $0x20] sm:$0xff] %v183
    %331 = vst [vmem:[#allocation2 + $0x28] sm:$0xff] %v293
    %332 = vst [vmem:[#allocation2 + $0x30] sm:$0xff] %v187
    %333 = vst [vmem:[#allocation2 + $0x38] sm:$0xff] %v189
    %334 = vst [vmem:[#allocation2 + $0x40] sm:$0xff] %v298
    %335 = vst [vmem:[#allocation2 + $0x48] sm:$0xff] %v193
    %336 = vst [vmem:[#allocation2 + $0x50] sm:$0xff] %v195
    %337 = vst [vmem:[#allocation2 + $0x58] sm:$0xff] %v303
    %338 = vst [vmem:[#allocation2 + $0x60] sm:$0xff] %v199
    %339 = vst [vmem:[#allocation2 + $0x68] sm:$0xff] %v201
    %340 = vst [vmem:[#allocation2 + $0x70] sm:$0xff] %v308
    %341 = vst [vmem:[#allocation2 + $0x78] sm:$0xff] %v205
    %342 = vst [vmem:[#allocation2 + $0x80] sm:$0xff] %v207
    %343 = vst [vmem:[#allocation2 + $0x88] sm:$0xff] %v313
    %344 = vst [vmem:[#allocation2 + $0x90] sm:$0xff] %v211
    %345 = vst [vmem:[#allocation2 + $0x98] sm:$0xff] %v213
    %346 = vst [vmem:[#allocation2 + $0xa0] sm:$0xff] %v318
    %347 = vst [vmem:[#allocation2 + $0xa8] sm:$0xff] %v217
    %348 = vst [vmem:[#allocation2 + $0xb0] sm:$0xff] %v219
    %349 = vst [vmem:[#allocation2 + $0xb8] sm:$0xff] %v323
    %s350 = scalar_lea.vmem %s0, 64
    %v351 = vld [vmem:[%s350] sm:$0xff]
    %v352 = vld [vmem:[%s350 + $0x8] sm:$0xff]
    %v353 = vld [vmem:[%s350 + $0x10] sm:$0xff]
    %v354 = vld [vmem:[%s350 + $0x18] sm:$0xff]
    %v355 = vld [vmem:[%s350 + $0x20] sm:$0xff]
    %v356 = vld [vmem:[%s350 + $0x28] sm:$0xff]
    %v357 = vld [vmem:[%s350 + $0x30] sm:$0xff]
    %v358 = vld [vmem:[%s350 + $0x38] sm:$0xff]
    %s359 = scalar_lea.vmem %s1, 96
    %v360 = vld [vmem:[%s359] sm:$0xff]
    %v361 = vld [vmem:[%s359 + $0x8] sm:$0xff]
    %v362 = vld [vmem:[%s359 + $0x10] sm:$0xff]
    %v363 = vld [vmem:[%s359 + $0x18] sm:$0xff]
    %v364 = vld [vmem:[%s359 + $0x20] sm:$0xff]
    %v365 = vld [vmem:[%s359 + $0x28] sm:$0xff]
    %v366 = vld [vmem:[%s359 + $0x30] sm:$0xff]
    %v367 = vld [vmem:[%s359 + $0x38] sm:$0xff]
    %v368 = vld [vmem:[%s359 + $0x40] sm:$0xff]
    %v369 = vld [vmem:[%s359 + $0x48] sm:$0xff]
    %v370 = vld [vmem:[%s359 + $0x50] sm:$0xff]
    %v371 = vld [vmem:[%s359 + $0x58] sm:$0xff]
    %s372 = scalar_lea.vmem %s2, 64
    %v373 = vld [vmem:[%s372] sm:$0xff]
    %v374 = vld [vmem:[%s372 + $0x8] sm:$0xff]
    %v375 = vld [vmem:[%s372 + $0x10] sm:$0xff]
    %v376 = vld [vmem:[%s372 + $0x18] sm:$0xff]
    %v377 = vld [vmem:[%s372 + $0x20] sm:$0xff]
    %v378 = vld [vmem:[%s372 + $0x28] sm:$0xff]
    %v379 = vld [vmem:[%s372 + $0x30] sm:$0xff]
    %v380 = vld [vmem:[%s372 + $0x38] sm:$0xff]
    %382 = vset.pattern.permute.xlu0 0
    %383 = vperm.xlu0 %382, %v373
    %v384 = vpop.permute.xlu0 %383
    %387 = vset.pattern.permute.xlu0 0
    %388 = vperm.xlu0 %387, %v374
    %v389 = vpop.permute.xlu0 %388
    %392 = vset.pattern.permute.xlu0 0
    %393 = vperm.xlu0 %392, %v375
    %v394 = vpop.permute.xlu0 %393
    %397 = vset.pattern.permute.xlu0 0
    %398 = vperm.xlu0 %397, %v376
    %v399 = vpop.permute.xlu0 %398
    %402 = vset.pattern.permute.xlu0 0
    %403 = vperm.xlu0 %402, %v377
    %v404 = vpop.permute.xlu0 %403
    %407 = vset.pattern.permute.xlu0 0
    %408 = vperm.xlu0 %407, %v378
    %v409 = vpop.permute.xlu0 %408
    %412 = vset.pattern.permute.xlu0 0
    %413 = vperm.xlu0 %412, %v379
    %v414 = vpop.permute.xlu0 %413
    %417 = vset.pattern.permute.xlu0 0
    %418 = vperm.xlu0 %417, %v380
    %v419 = vpop.permute.xlu0 %418
    %v422 = vsel %vm83, %v351, 0
    %v425 = vsel %vm83, %v352, 0
    %v428 = vsel %vm83, %v353, 0
    %v431 = vsel %vm83, %v354, 0
    %v434 = vsel %vm83, %v355, 0
    %v437 = vsel %vm83, %v356, 0
    %v440 = vsel %vm83, %v357, 0
    %v443 = vsel %vm83, %v358, 0
    %445 = vmatprep.subr.mxu0 0.0
    %446 = vmatpush1.msra.mxu0 0.0
    %447 = vmatprep.subr.mxu0 0.0
    %448 = vmatpush1.msra.mxu0 0.0
    %449 = vmatprep.subr.mxu0 0.0
    %450 = vmatpush1.msra.mxu0 0.0
    %451 = vmatprep.subr.mxu0 0.0
    %452 = vmatpush1.msra.mxu0 0.0
    %453 = vmatprep.subr.mxu0 0.0
    %454 = vmatpush1.msra.mxu0 0.0
    %455 = vmatprep.subr.mxu0 0.0
    %456 = vmatpush1.msra.mxu0 0.0
    %457 = vmatprep.subr.mxu0 0.0
    %458 = vmatpush1.msra.mxu0 0.0
    %459 = vmatprep.subr.mxu0 0.0
    %460 = vmatpush1.msra.mxu0 0.0
    %461 = vmatprep.subr.mxu0 0.0
    %462 = vmatpush1.msra.mxu0 0.0
    %463 = vmatprep.subr.mxu0 0.0
    %464 = vmatpush1.msra.mxu0 0.0
    %465 = vmatprep.subr.mxu0 0.0
    %466 = vmatpush1.msra.mxu0 0.0
    %467 = vmatprep.subr.mxu0 0.0
    %468 = vmatpush1.msra.mxu0 0.0
    %469 = vmatprep.subr.mxu0 %v370
    %470 = vmatpush1.msra.mxu0 %v369
    %471 = vmatprep.subr.mxu0 %v367
    %472 = vmatpush1.msra.mxu0 %v366
    %473 = vmatprep.subr.mxu0 %v364
    %474 = vmatpush1.msra.mxu0 %v363
    %475 = vmatprep.subr.mxu0 %v361
    %476 = vmatpush1.msra.mxu0 %v360
    %477 = vmatprep.subr.mxu0 0.0
    %478 = vmatpush2.msra.mxu0 0.0
    %479 = vmatprep.subr.mxu0 0.0
    %480 = vmatpush2.msra.mxu0 0.0
    %481 = vmatprep.subr.mxu0 0.0
    %482 = vmatpush2.msra.mxu0 0.0
    %483 = vmatprep.subr.mxu0 0.0
    %484 = vmatpush2.msra.mxu0 0.0
    %485 = vmatprep.subr.mxu0 0.0
    %486 = vmatpush2.msra.mxu0 0.0
    %487 = vmatprep.subr.mxu0 0.0
    %488 = vmatpush2.msra.mxu0 0.0
    %489 = vmatprep.subr.mxu0 0.0
    %490 = vmatpush2.msra.mxu0 0.0
    %491 = vmatprep.subr.mxu0 0.0
    %492 = vmatpush2.msra.mxu0 0.0
    %493 = vmatprep.subr.mxu0 0.0
    %494 = vmatpush2.msra.mxu0 0.0
    %495 = vmatprep.subr.mxu0 0.0
    %496 = vmatpush2.msra.mxu0 0.0
    %497 = vmatprep.subr.mxu0 0.0
    %498 = vmatpush2.msra.mxu0 0.0
    %499 = vmatprep.subr.mxu0 0.0
    %500 = vmatpush2.msra.mxu0 0.0
    %501 = vmatprep.subr.mxu0 0.0
    %502 = vmatpush2.msra.mxu0 0.0
    %503 = vmatprep.subr.mxu0 0.0
    %504 = vmatpush2.msra.mxu0 0.0
    %505 = vmatprep.subr.mxu0 0.0
    %506 = vmatpush2.msra.mxu0 0.0
    %507 = vmatprep.subr.mxu0 0.0
    %508 = vmatpush2.msra.mxu0 0.0
    %509 = vmatprep.mubr.f32.mxu0 0.0
    %510 = vmatmul.mubr.f32.gmra.mxu0 %v422
    %v511 = vpop.f32.mrf.mxu0
    %v512 = vadd.f32 %v384, %v511
    %v513 = vpop.f32.mrf.mxu0
    %v514 = vadd.f32 %v384, %v513
    %515 = vmatprep.mubr.f32.mxu0 0.0
    %516 = vmatmul.mubr.f32.gmra.mxu0 %v425
    %v517 = vpop.f32.mrf.mxu0
    %v518 = vadd.f32 %v389, %v517
    %v519 = vpop.f32.mrf.mxu0
    %v520 = vadd.f32 %v389, %v519
    %521 = vmatprep.mubr.f32.mxu0 0.0
    %522 = vmatmul.mubr.f32.gmra.mxu0 %v428
    %v523 = vpop.f32.mrf.mxu0
    %v524 = vadd.f32 %v394, %v523
    %v525 = vpop.f32.mrf.mxu0
    %v526 = vadd.f32 %v394, %v525
    %527 = vmatprep.mubr.f32.mxu0 0.0
    %528 = vmatmul.mubr.f32.gmra.mxu0 %v431
    %v529 = vpop.f32.mrf.mxu0
    %v530 = vadd.f32 %v399, %v529
    %v531 = vpop.f32.mrf.mxu0
    %v532 = vadd.f32 %v399, %v531
    %533 = vmatprep.mubr.f32.mxu0 0.0
    %534 = vmatmul.mubr.f32.gmra.mxu0 %v434
    %v535 = vpop.f32.mrf.mxu0
    %v536 = vadd.f32 %v404, %v535
    %v537 = vpop.f32.mrf.mxu0
    %v538 = vadd.f32 %v404, %v537
    %539 = vmatprep.mubr.f32.mxu0 0.0
    %540 = vmatmul.mubr.f32.gmra.mxu0 %v437
    %v541 = vpop.f32.mrf.mxu0
    %v542 = vadd.f32 %v409, %v541
    %v543 = vpop.f32.mrf.mxu0
    %v544 = vadd.f32 %v409, %v543
    %545 = vmatprep.mubr.f32.mxu0 0.0
    %546 = vmatmul.mubr.f32.gmra.mxu0 %v440
    %v547 = vpop.f32.mrf.mxu0
    %v548 = vadd.f32 %v414, %v547
    %v549 = vpop.f32.mrf.mxu0
    %v550 = vadd.f32 %v414, %v549
    %551 = vmatprep.mubr.f32.mxu0 0.0
    %552 = vmatmul.mubr.f32.gmra.mxu0 %v443
    %v553 = vpop.f32.mrf.mxu0
    %v554 = vadd.f32 %v419, %v553
    %v555 = vpop.f32.mrf.mxu0
    %v556 = vadd.f32 %v419, %v555
    %557 = vdwg.mxu0
    %558 = vmatprep.subr.mxu0 0.0
    %559 = vmatpush1.msra.mxu0 0.0
    %560 = vmatprep.subr.mxu0 0.0
    %561 = vmatpush1.msra.mxu0 0.0
    %562 = vmatprep.subr.mxu0 0.0
    %563 = vmatpush1.msra.mxu0 0.0
    %564 = vmatprep.subr.mxu0 0.0
    %565 = vmatpush1.msra.mxu0 0.0
    %566 = vmatprep.subr.mxu0 0.0
    %567 = vmatpush1.msra.mxu0 0.0
    %568 = vmatprep.subr.mxu0 0.0
    %569 = vmatpush1.msra.mxu0 0.0
    %570 = vmatprep.subr.mxu0 0.0
    %571 = vmatpush1.msra.mxu0 0.0
    %572 = vmatprep.subr.mxu0 0.0
    %573 = vmatpush1.msra.mxu0 0.0
    %574 = vmatprep.subr.mxu0 0.0
    %575 = vmatpush1.msra.mxu0 0.0
    %576 = vmatprep.subr.mxu0 0.0
    %577 = vmatpush1.msra.mxu0 0.0
    %578 = vmatprep.subr.mxu0 0.0
    %579 = vmatpush1.msra.mxu0 0.0
    %580 = vmatprep.subr.mxu0 0.0
    %581 = vmatpush1.msra.mxu0 0.0
    %582 = vmatprep.subr.mxu0 0.0
    %583 = vmatpush1.msra.mxu0 %v371
    %584 = vmatprep.subr.mxu0 0.0
    %585 = vmatpush1.msra.mxu0 %v368
    %586 = vmatprep.subr.mxu0 0.0
    %587 = vmatpush1.msra.mxu0 %v365
    %588 = vmatprep.subr.mxu0 0.0
    %589 = vmatpush1.msra.mxu0 %v362
    %590 = vmatprep.subr.mxu0 0.0
    %591 = vmatpush2.msra.mxu0 0.0
    %592 = vmatprep.subr.mxu0 0.0
    %593 = vmatpush2.msra.mxu0 0.0
    %594 = vmatprep.subr.mxu0 0.0
    %595 = vmatpush2.msra.mxu0 0.0
    %596 = vmatprep.subr.mxu0 0.0
    %597 = vmatpush2.msra.mxu0 0.0
    %598 = vmatprep.subr.mxu0 0.0
    %599 = vmatpush2.msra.mxu0 0.0
    %600 = vmatprep.subr.mxu0 0.0
    %601 = vmatpush2.msra.mxu0 0.0
    %602 = vmatprep.subr.mxu0 0.0
    %603 = vmatpush2.msra.mxu0 0.0
    %604 = vmatprep.subr.mxu0 0.0
    %605 = vmatpush2.msra.mxu0 0.0
    %606 = vmatprep.subr.mxu0 0.0
    %607 = vmatpush2.msra.mxu0 0.0
    %608 = vmatprep.subr.mxu0 0.0
    %609 = vmatpush2.msra.mxu0 0.0
    %610 = vmatprep.subr.mxu0 0.0
    %611 = vmatpush2.msra.mxu0 0.0
    %612 = vmatprep.subr.mxu0 0.0
    %613 = vmatpush2.msra.mxu0 0.0
    %614 = vmatprep.subr.mxu0 0.0
    %615 = vmatpush2.msra.mxu0 0.0
    %616 = vmatprep.subr.mxu0 0.0
    %617 = vmatpush2.msra.mxu0 0.0
    %618 = vmatprep.subr.mxu0 0.0
    %619 = vmatpush2.msra.mxu0 0.0
    %620 = vmatprep.subr.mxu0 0.0
    %621 = vmatpush2.msra.mxu0 0.0
    %622 = vmatprep.mubr.f32.mxu0 0.0
    %623 = vmatmul.mubr.f32.gmra.mxu0 %v422
    %v624 = vpop.f32.mrf.mxu0
    %v625 = vadd.f32 %v384, %v624
    %v626 = vpop.f32.mrf.mxu0
    %627 = vmatprep.mubr.f32.mxu0 0.0
    %628 = vmatmul.mubr.f32.gmra.mxu0 %v425
    %v629 = vpop.f32.mrf.mxu0
    %v630 = vadd.f32 %v389, %v629
    %v631 = vpop.f32.mrf.mxu0
    %632 = vmatprep.mubr.f32.mxu0 0.0
    %633 = vmatmul.mubr.f32.gmra.mxu0 %v428
    %v634 = vpop.f32.mrf.mxu0
    %v635 = vadd.f32 %v394, %v634
    %v636 = vpop.f32.mrf.mxu0
    %637 = vmatprep.mubr.f32.mxu0 0.0
    %638 = vmatmul.mubr.f32.gmra.mxu0 %v431
    %v639 = vpop.f32.mrf.mxu0
    %v640 = vadd.f32 %v399, %v639
    %v641 = vpop.f32.mrf.mxu0
    %642 = vmatprep.mubr.f32.mxu0 0.0
    %643 = vmatmul.mubr.f32.gmra.mxu0 %v434
    %v644 = vpop.f32.mrf.mxu0
    %v645 = vadd.f32 %v404, %v644
    %v646 = vpop.f32.mrf.mxu0
    %647 = vmatprep.mubr.f32.mxu0 0.0
    %648 = vmatmul.mubr.f32.gmra.mxu0 %v437
    %v649 = vpop.f32.mrf.mxu0
    %v650 = vadd.f32 %v409, %v649
    %v651 = vpop.f32.mrf.mxu0
    %652 = vmatprep.mubr.f32.mxu0 0.0
    %653 = vmatmul.mubr.f32.gmra.mxu0 %v440
    %v654 = vpop.f32.mrf.mxu0
    %v655 = vadd.f32 %v414, %v654
    %v656 = vpop.f32.mrf.mxu0
    %657 = vmatprep.mubr.f32.mxu0 0.0
    %658 = vmatmul.mubr.f32.gmra.mxu0 %v443
    %v659 = vpop.f32.mrf.mxu0
    %v660 = vadd.f32 %v419, %v659
    %v661 = vpop.f32.mrf.mxu0
    %662 = vdwg.mxu0
    %s663 = scalar_lea.vmem [#allocation2], 192
    %664 = vst [vmem:[%s663] sm:$0xff] %v512
    %665 = vst [vmem:[%s663 + $0x8] sm:$0xff] %v514
    %666 = vst [vmem:[%s663 + $0x10] sm:$0xff] %v625
    %667 = vst [vmem:[%s663 + $0x18] sm:$0xff] %v518
    %668 = vst [vmem:[%s663 + $0x20] sm:$0xff] %v520
    %669 = vst [vmem:[%s663 + $0x28] sm:$0xff] %v630
    %670 = vst [vmem:[%s663 + $0x30] sm:$0xff] %v524
    %671 = vst [vmem:[%s663 + $0x38] sm:$0xff] %v526
    %672 = vst [vmem:[%s663 + $0x40] sm:$0xff] %v635
    %673 = vst [vmem:[%s663 + $0x48] sm:$0xff] %v530
    %674 = vst [vmem:[%s663 + $0x50] sm:$0xff] %v532
    %675 = vst [vmem:[%s663 + $0x58] sm:$0xff] %v640
    %676 = vst [vmem:[%s663 + $0x60] sm:$0xff] %v536
    %677 = vst [vmem:[%s663 + $0x68] sm:$0xff] %v538
    %678 = vst [vmem:[%s663 + $0x70] sm:$0xff] %v645
    %679 = vst [vmem:[%s663 + $0x78] sm:$0xff] %v542
    %680 = vst [vmem:[%s663 + $0x80] sm:$0xff] %v544
    %681 = vst [vmem:[%s663 + $0x88] sm:$0xff] %v650
    %682 = vst [vmem:[%s663 + $0x90] sm:$0xff] %v548
    %683 = vst [vmem:[%s663 + $0x98] sm:$0xff] %v550
    %684 = vst [vmem:[%s663 + $0xa0] sm:$0xff] %v655
    %685 = vst [vmem:[%s663 + $0xa8] sm:$0xff] %v554
    %686 = vst [vmem:[%s663 + $0xb0] sm:$0xff] %v556
    %687 = vst [vmem:[%s663 + $0xb8] sm:$0xff] %v660
    %s688 = scalar_lea.vmem %s0, 128
    %v689 = vld [vmem:[%s688] sm:$0xff]
    %v690 = vld [vmem:[%s688 + $0x8] sm:$0xff]
    %v691 = vld [vmem:[%s688 + $0x10] sm:$0xff]
    %v692 = vld [vmem:[%s688 + $0x18] sm:$0xff]
    %v693 = vld [vmem:[%s688 + $0x20] sm:$0xff]
    %v694 = vld [vmem:[%s688 + $0x28] sm:$0xff]
    %v695 = vld [vmem:[%s688 + $0x30] sm:$0xff]
    %v696 = vld [vmem:[%s688 + $0x38] sm:$0xff]
    %s697 = scalar_lea.vmem %s1, 192
    %v698 = vld [vmem:[%s697] sm:$0xff]
    %v699 = vld [vmem:[%s697 + $0x8] sm:$0xff]
    %v700 = vld [vmem:[%s697 + $0x10] sm:$0xff]
    %v701 = vld [vmem:[%s697 + $0x18] sm:$0xff]
    %v702 = vld [vmem:[%s697 + $0x20] sm:$0xff]
    %v703 = vld [vmem:[%s697 + $0x28] sm:$0xff]
    %v704 = vld [vmem:[%s697 + $0x30] sm:$0xff]
    %v705 = vld [vmem:[%s697 + $0x38] sm:$0xff]
    %v706 = vld [vmem:[%s697 + $0x40] sm:$0xff]
    %v707 = vld [vmem:[%s697 + $0x48] sm:$0xff]
    %v708 = vld [vmem:[%s697 + $0x50] sm:$0xff]
    %v709 = vld [vmem:[%s697 + $0x58] sm:$0xff]
    %s710 = scalar_lea.vmem %s2, 128
    %v711 = vld [vmem:[%s710] sm:$0xff]
    %v712 = vld [vmem:[%s710 + $0x8] sm:$0xff]
    %v713 = vld [vmem:[%s710 + $0x10] sm:$0xff]
    %v714 = vld [vmem:[%s710 + $0x18] sm:$0xff]
    %v715 = vld [vmem:[%s710 + $0x20] sm:$0xff]
    %v716 = vld [vmem:[%s710 + $0x28] sm:$0xff]
    %v717 = vld [vmem:[%s710 + $0x30] sm:$0xff]
    %v718 = vld [vmem:[%s710 + $0x38] sm:$0xff]
    %720 = vset.pattern.permute.xlu0 0
    %721 = vperm.xlu0 %720, %v711
    %v722 = vpop.permute.xlu0 %721
    %725 = vset.pattern.permute.xlu0 0
    %726 = vperm.xlu0 %725, %v712
    %v727 = vpop.permute.xlu0 %726
    %730 = vset.pattern.permute.xlu0 0
    %731 = vperm.xlu0 %730, %v713
    %v732 = vpop.permute.xlu0 %731
    %735 = vset.pattern.permute.xlu0 0
    %736 = vperm.xlu0 %735, %v714
    %v737 = vpop.permute.xlu0 %736
    %740 = vset.pattern.permute.xlu0 0
    %741 = vperm.xlu0 %740, %v715
    %v742 = vpop.permute.xlu0 %741
    %745 = vset.pattern.permute.xlu0 0
    %746 = vperm.xlu0 %745, %v716
    %v747 = vpop.permute.xlu0 %746
    %750 = vset.pattern.permute.xlu0 0
    %751 = vperm.xlu0 %750, %v717
    %v752 = vpop.permute.xlu0 %751
    %755 = vset.pattern.permute.xlu0 0
    %756 = vperm.xlu0 %755, %v718
    %v757 = vpop.permute.xlu0 %756
    %v760 = vsel %vm83, %v689, 0
    %v763 = vsel %vm83, %v690, 0
    %v766 = vsel %vm83, %v691, 0
    %v769 = vsel %vm83, %v692, 0
    %v772 = vsel %vm83, %v693, 0
    %v775 = vsel %vm83, %v694, 0
    %v778 = vsel %vm83, %v695, 0
    %v781 = vsel %vm83, %v696, 0
    %783 = vmatprep.subr.mxu0 0.0
    %784 = vmatpush1.msra.mxu0 0.0
    %785 = vmatprep.subr.mxu0 0.0
    %786 = vmatpush1.msra.mxu0 0.0
    %787 = vmatprep.subr.mxu0 0.0
    %788 = vmatpush1.msra.mxu0 0.0
    %789 = vmatprep.subr.mxu0 0.0
    %790 = vmatpush1.msra.mxu0 0.0
    %791 = vmatprep.subr.mxu0 0.0
    %792 = vmatpush1.msra.mxu0 0.0
    %793 = vmatprep.subr.mxu0 0.0
    %794 = vmatpush1.msra.mxu0 0.0
    %795 = vmatprep.subr.mxu0 0.0
    %796 = vmatpush1.msra.mxu0 0.0
    %797 = vmatprep.subr.mxu0 0.0
    %798 = vmatpush1.msra.mxu0 0.0
    %799 = vmatprep.subr.mxu0 0.0
    %800 = vmatpush1.msra.mxu0 0.0
    %801 = vmatprep.subr.mxu0 0.0
    %802 = vmatpush1.msra.mxu0 0.0
    %803 = vmatprep.subr.mxu0 0.0
    %804 = vmatpush1.msra.mxu0 0.0
    %805 = vmatprep.subr.mxu0 0.0
    %806 = vmatpush1.msra.mxu0 0.0
    %807 = vmatprep.subr.mxu0 %v708
    %808 = vmatpush1.msra.mxu0 %v707
    %809 = vmatprep.subr.mxu0 %v705
    %810 = vmatpush1.msra.mxu0 %v704
    %811 = vmatprep.subr.mxu0 %v702
    %812 = vmatpush1.msra.mxu0 %v701
    %813 = vmatprep.subr.mxu0 %v699
    %814 = vmatpush1.msra.mxu0 %v698
    %815 = vmatprep.subr.mxu0 0.0
    %816 = vmatpush2.msra.mxu0 0.0
    %817 = vmatprep.subr.mxu0 0.0
    %818 = vmatpush2.msra.mxu0 0.0
    %819 = vmatprep.subr.mxu0 0.0
    %820 = vmatpush2.msra.mxu0 0.0
    %821 = vmatprep.subr.mxu0 0.0
    %822 = vmatpush2.msra.mxu0 0.0
    %823 = vmatprep.subr.mxu0 0.0
    %824 = vmatpush2.msra.mxu0 0.0
    %825 = vmatprep.subr.mxu0 0.0
    %826 = vmatpush2.msra.mxu0 0.0
    %827 = vmatprep.subr.mxu0 0.0
    %828 = vmatpush2.msra.mxu0 0.0
    %829 = vmatprep.subr.mxu0 0.0
    %830 = vmatpush2.msra.mxu0 0.0
    %831 = vmatprep.subr.mxu0 0.0
    %832 = vmatpush2.msra.mxu0 0.0
    %833 = vmatprep.subr.mxu0 0.0
    %834 = vmatpush2.msra.mxu0 0.0
    %835 = vmatprep.subr.mxu0 0.0
    %836 = vmatpush2.msra.mxu0 0.0
    %837 = vmatprep.subr.mxu0 0.0
    %838 = vmatpush2.msra.mxu0 0.0
    %839 = vmatprep.subr.mxu0 0.0
    %840 = vmatpush2.msra.mxu0 0.0
    %841 = vmatprep.subr.mxu0 0.0
    %842 = vmatpush2.msra.mxu0 0.0
    %843 = vmatprep.subr.mxu0 0.0
    %844 = vmatpush2.msra.mxu0 0.0
    %845 = vmatprep.subr.mxu0 0.0
    %846 = vmatpush2.msra.mxu0 0.0
    %847 = vmatprep.mubr.f32.mxu0 0.0
    %848 = vmatmul.mubr.f32.gmra.mxu0 %v760
    %v849 = vpop.f32.mrf.mxu0
    %v850 = vadd.f32 %v722, %v849
    %v851 = vpop.f32.mrf.mxu0
    %v852 = vadd.f32 %v722, %v851
    %853 = vmatprep.mubr.f32.mxu0 0.0
    %854 = vmatmul.mubr.f32.gmra.mxu0 %v763
    %v855 = vpop.f32.mrf.mxu0
    %v856 = vadd.f32 %v727, %v855
    %v857 = vpop.f32.mrf.mxu0
    %v858 = vadd.f32 %v727, %v857
    %859 = vmatprep.mubr.f32.mxu0 0.0
    %860 = vmatmul.mubr.f32.gmra.mxu0 %v766
    %v861 = vpop.f32.mrf.mxu0
    %v862 = vadd.f32 %v732, %v861
    %v863 = vpop.f32.mrf.mxu0
    %v864 = vadd.f32 %v732, %v863
    %865 = vmatprep.mubr.f32.mxu0 0.0
    %866 = vmatmul.mubr.f32.gmra.mxu0 %v769
    %v867 = vpop.f32.mrf.mxu0
    %v868 = vadd.f32 %v737, %v867
    %v869 = vpop.f32.mrf.mxu0
    %v870 = vadd.f32 %v737, %v869
    %871 = vmatprep.mubr.f32.mxu0 0.0
    %872 = vmatmul.mubr.f32.gmra.mxu0 %v772
    %v873 = vpop.f32.mrf.mxu0
    %v874 = vadd.f32 %v742, %v873
    %v875 = vpop.f32.mrf.mxu0
    %v876 = vadd.f32 %v742, %v875
    %877 = vmatprep.mubr.f32.mxu0 0.0
    %878 = vmatmul.mubr.f32.gmra.mxu0 %v775
    %v879 = vpop.f32.mrf.mxu0
    %v880 = vadd.f32 %v747, %v879
    %v881 = vpop.f32.mrf.mxu0
    %v882 = vadd.f32 %v747, %v881
    %883 = vmatprep.mubr.f32.mxu0 0.0
    %884 = vmatmul.mubr.f32.gmra.mxu0 %v778
    %v885 = vpop.f32.mrf.mxu0
    %v886 = vadd.f32 %v752, %v885
    %v887 = vpop.f32.mrf.mxu0
    %v888 = vadd.f32 %v752, %v887
    %889 = vmatprep.mubr.f32.mxu0 0.0
    %890 = vmatmul.mubr.f32.gmra.mxu0 %v781
    %v891 = vpop.f32.mrf.mxu0
    %v892 = vadd.f32 %v757, %v891
    %v893 = vpop.f32.mrf.mxu0
    %v894 = vadd.f32 %v757, %v893
    %895 = vdwg.mxu0
    %896 = vmatprep.subr.mxu0 0.0
    %897 = vmatpush1.msra.mxu0 0.0
    %898 = vmatprep.subr.mxu0 0.0
    %899 = vmatpush1.msra.mxu0 0.0
    %900 = vmatprep.subr.mxu0 0.0
    %901 = vmatpush1.msra.mxu0 0.0
    %902 = vmatprep.subr.mxu0 0.0
    %903 = vmatpush1.msra.mxu0 0.0
    %904 = vmatprep.subr.mxu0 0.0
    %905 = vmatpush1.msra.mxu0 0.0
    %906 = vmatprep.subr.mxu0 0.0
    %907 = vmatpush1.msra.mxu0 0.0
    %908 = vmatprep.subr.mxu0 0.0
    %909 = vmatpush1.msra.mxu0 0.0
    %910 = vmatprep.subr.mxu0 0.0
    %911 = vmatpush1.msra.mxu0 0.0
    %912 = vmatprep.subr.mxu0 0.0
    %913 = vmatpush1.msra.mxu0 0.0
    %914 = vmatprep.subr.mxu0 0.0
    %915 = vmatpush1.msra.mxu0 0.0
    %916 = vmatprep.subr.mxu0 0.0
    %917 = vmatpush1.msra.mxu0 0.0
    %918 = vmatprep.subr.mxu0 0.0
    %919 = vmatpush1.msra.mxu0 0.0
    %920 = vmatprep.subr.mxu0 0.0
    %921 = vmatpush1.msra.mxu0 %v709
    %922 = vmatprep.subr.mxu0 0.0
    %923 = vmatpush1.msra.mxu0 %v706
    %924 = vmatprep.subr.mxu0 0.0
    %925 = vmatpush1.msra.mxu0 %v703
    %926 = vmatprep.subr.mxu0 0.0
    %927 = vmatpush1.msra.mxu0 %v700
    %928 = vmatprep.subr.mxu0 0.0
    %929 = vmatpush2.msra.mxu0 0.0
    %930 = vmatprep.subr.mxu0 0.0
    %931 = vmatpush2.msra.mxu0 0.0
    %932 = vmatprep.subr.mxu0 0.0
    %933 = vmatpush2.msra.mxu0 0.0
    %934 = vmatprep.subr.mxu0 0.0
    %935 = vmatpush2.msra.mxu0 0.0
    %936 = vmatprep.subr.mxu0 0.0
    %937 = vmatpush2.msra.mxu0 0.0
    %938 = vmatprep.subr.mxu0 0.0
    %939 = vmatpush2.msra.mxu0 0.0
    %940 = vmatprep.subr.mxu0 0.0
    %941 = vmatpush2.msra.mxu0 0.0
    %942 = vmatprep.subr.mxu0 0.0
    %943 = vmatpush2.msra.mxu0 0.0
    %944 = vmatprep.subr.mxu0 0.0
    %945 = vmatpush2.msra.mxu0 0.0
    %946 = vmatprep.subr.mxu0 0.0
    %947 = vmatpush2.msra.mxu0 0.0
    %948 = vmatprep.subr.mxu0 0.0
    %949 = vmatpush2.msra.mxu0 0.0
    %950 = vmatprep.subr.mxu0 0.0
    %951 = vmatpush2.msra.mxu0 0.0
    %952 = vmatprep.subr.mxu0 0.0
    %953 = vmatpush2.msra.mxu0 0.0
    %954 = vmatprep.subr.mxu0 0.0
    %955 = vmatpush2.msra.mxu0 0.0
    %956 = vmatprep.subr.mxu0 0.0
    %957 = vmatpush2.msra.mxu0 0.0
    %958 = vmatprep.subr.mxu0 0.0
    %959 = vmatpush2.msra.mxu0 0.0
    %960 = vmatprep.mubr.f32.mxu0 0.0
    %961 = vmatmul.mubr.f32.gmra.mxu0 %v760
    %v962 = vpop.f32.mrf.mxu0
    %v963 = vadd.f32 %v722, %v962
    %v964 = vpop.f32.mrf.mxu0
    %965 = vmatprep.mubr.f32.mxu0 0.0
    %966 = vmatmul.mubr.f32.gmra.mxu0 %v763
    %v967 = vpop.f32.mrf.mxu0
    %v968 = vadd.f32 %v727, %v967
    %v969 = vpop.f32.mrf.mxu0
    %970 = vmatprep.mubr.f32.mxu0 0.0
    %971 = vmatmul.mubr.f32.gmra.mxu0 %v766
    %v972 = vpop.f32.mrf.mxu0
    %v973 = vadd.f32 %v732, %v972
    %v974 = vpop.f32.mrf.mxu0
    %975 = vmatprep.mubr.f32.mxu0 0.0
    %976 = vmatmul.mubr.f32.gmra.mxu0 %v769
    %v977 = vpop.f32.mrf.mxu0
    %v978 = vadd.f32 %v737, %v977
    %v979 = vpop.f32.mrf.mxu0
    %980 = vmatprep.mubr.f32.mxu0 0.0
    %981 = vmatmul.mubr.f32.gmra.mxu0 %v772
    %v982 = vpop.f32.mrf.mxu0
    %v983 = vadd.f32 %v742, %v982
    %v984 = vpop.f32.mrf.mxu0
    %985 = vmatprep.mubr.f32.mxu0 0.0
    %986 = vmatmul.mubr.f32.gmra.mxu0 %v775
    %v987 = vpop.f32.mrf.mxu0
    %v988 = vadd.f32 %v747, %v987
    %v989 = vpop.f32.mrf.mxu0
    %990 = vmatprep.mubr.f32.mxu0 0.0
    %991 = vmatmul.mubr.f32.gmra.mxu0 %v778
    %v992 = vpop.f32.mrf.mxu0
    %v993 = vadd.f32 %v752, %v992
    %v994 = vpop.f32.mrf.mxu0
    %995 = vmatprep.mubr.f32.mxu0 0.0
    %996 = vmatmul.mubr.f32.gmra.mxu0 %v781
    %v997 = vpop.f32.mrf.mxu0
    %v998 = vadd.f32 %v757, %v997
    %v999 = vpop.f32.mrf.mxu0
    %1000 = vdwg.mxu0
    %s1001 = scalar_lea.vmem [#allocation2], 384
    %1002 = vst [vmem:[%s1001] sm:$0xff] %v850
    %1003 = vst [vmem:[%s1001 + $0x8] sm:$0xff] %v852
    %1004 = vst [vmem:[%s1001 + $0x10] sm:$0xff] %v963
    %1005 = vst [vmem:[%s1001 + $0x18] sm:$0xff] %v856
    %1006 = vst [vmem:[%s1001 + $0x20] sm:$0xff] %v858
    %1007 = vst [vmem:[%s1001 + $0x28] sm:$0xff] %v968
    %1008 = vst [vmem:[%s1001 + $0x30] sm:$0xff] %v862
    %1009 = vst [vmem:[%s1001 + $0x38] sm:$0xff] %v864
    %1010 = vst [vmem:[%s1001 + $0x40] sm:$0xff] %v973
    %1011 = vst [vmem:[%s1001 + $0x48] sm:$0xff] %v868
    %1012 = vst [vmem:[%s1001 + $0x50] sm:$0xff] %v870
    %1013 = vst [vmem:[%s1001 + $0x58] sm:$0xff] %v978
    %1014 = vst [vmem:[%s1001 + $0x60] sm:$0xff] %v874
    %1015 = vst [vmem:[%s1001 + $0x68] sm:$0xff] %v876
    %1016 = vst [vmem:[%s1001 + $0x70] sm:$0xff] %v983
    %1017 = vst [vmem:[%s1001 + $0x78] sm:$0xff] %v880
    %1018 = vst [vmem:[%s1001 + $0x80] sm:$0xff] %v882
    %1019 = vst [vmem:[%s1001 + $0x88] sm:$0xff] %v988
    %1020 = vst [vmem:[%s1001 + $0x90] sm:$0xff] %v886
    %1021 = vst [vmem:[%s1001 + $0x98] sm:$0xff] %v888
    %1022 = vst [vmem:[%s1001 + $0xa0] sm:$0xff] %v993
    %1023 = vst [vmem:[%s1001 + $0xa8] sm:$0xff] %v892
    %1024 = vst [vmem:[%s1001 + $0xb0] sm:$0xff] %v894
    %1025 = vst [vmem:[%s1001 + $0xb8] sm:$0xff] %v998
    // Predicated region
    $region14: #{tpu_custom_call.1} parent=1 // pred_check
      _
    $region15: #{tpu_custom_call.1} parent=1 // pred_check_branch
      %1027 = sbr.rel (0) target = $region17
    $region16: #{tpu_custom_call.1} parent=1 // pred_region
      %s1029 = ssub.s32 9216, 9216
      %1030 = vsyncadd [#allocation3], %s1029
      %s1031 = sshll.u32 [#allocation2], 4
      %s1032 = int_to_ptr.vmem [resolvable:$true] %s1031
      %1037 = dma.vmem_to_hbm [thread:$0]  %s1032, 9216, %s3, [#allocation3], 384, 384, 24
    $region17: #{tpu_custom_call.1} parent=1 // pred_fallthru
      _
    // Predicated region
    $region18: #{tpu_custom_call.1} parent=1 // pred_check
      _
    $region19: #{tpu_custom_call.1} parent=1 // pred_check_branch
      %1039 = sbr.rel (0) target = $region21
    $region20: #{tpu_custom_call.1} parent=1 // pred_region
      %1040 = dma.done [#allocation3], 9216
    $region21: #{tpu_custom_call.1} parent=1 // pred_fallthru
      _
    %1041 = vsyncpa [#allocation3], 1

</llo_original>
